<compile_context>
chip_gen: v5e
topology: v5e:2x2
jax: 0.10.0
libtpu: 0.0.40
codegen_flags: <defaults>
</compile_context>

<pallas_src>
import functools

import jax
import jax.numpy as jnp
from jax import lax
from jax.experimental import pallas as pl
from jax.experimental.pallas import tpu as pltpu


# ----------------------------------------------------------------------------
# Kernel
# ----------------------------------------------------------------------------
def _attention_kernel(x_ref, wq_ref, wk_ref, wv_ref, bq_ref, bk_ref, bv_ref,
                      wo_ref, bo_ref, o_ref, k_scr, v_scr,
                      *, n_heads, d_k, tq):
    # x_ref : [seq, C]  f32   (full sequence of one batch element, resident)
    # wq/wk/wv_ref : [C, H*dk] bf16 (scale folded into wq)
    # bq/bk/bv_ref : [1, H*dk] f32  (scale folded into bq)
    # wo_ref: [H*dk, C] bf16 ; bo_ref: [1, C] f32
    # o_ref : [tq, C]  f32   (one q-tile of the output)
    # k_scr / v_scr : [seq, H*dk] bf16 VMEM scratch (resident across q-tiles)
    qi = pl.program_id(1)

    # ---- once per batch element: project K and V for the whole sequence ----
    @pl.when(qi == 0)
    def _():
        xf = x_ref[...].astype(jnp.bfloat16)
        k = jnp.dot(xf, wk_ref[...], preferred_element_type=jnp.float32) + bk_ref[0]
        v = jnp.dot(xf, wv_ref[...], preferred_element_type=jnp.float32) + bv_ref[0]
        k_scr[...] = k.astype(jnp.bfloat16)
        v_scr[...] = v.astype(jnp.bfloat16)

    # ---- this q-tile -------------------------------------------------------
    row0 = qi * tq
    if tq % 8 == 0:
        row0 = pl.multiple_of(row0, 8)
    xq_f32 = x_ref[pl.ds(row0, tq), :]                    # [tq, C] f32 (residual)
    xq = xq_f32.astype(jnp.bfloat16)

    # Q projection (scale already folded into wq / bq in the wrapper).
    q = (jnp.dot(xq, wq_ref[...], preferred_element_type=jnp.float32)
         + bq_ref[0]).astype(jnp.bfloat16)                # [tq, H*dk]

    acc = jnp.zeros((tq, o_ref.shape[-1]), jnp.float32)   # output-proj accumulator
    for h in range(n_heads):
        lo, hi = h * d_k, (h + 1) * d_k
        qh = q[:, lo:hi]                                  # [tq,  dk] bf16
        kh = k_scr[:, lo:hi]                              # [seq, dk] bf16
        vh = v_scr[:, lo:hi]                              # [seq, dk] bf16

        # scores: contract d_k of q against d_k of k (no explicit k.T).
        s = lax.dot_general(qh, kh, (((1,), (1,)), ((), ())),
                            preferred_element_type=jnp.float32)   # [tq, seq]
        s = s - jnp.max(s, axis=1, keepdims=True)
        p = jnp.exp(s)                                            # f32 softmax
        p = p * pl.reciprocal(jnp.sum(p, axis=1, keepdims=True), approx=True)

        hv = jnp.dot(p.astype(jnp.bfloat16), vh,
                     preferred_element_type=jnp.float32)          # [tq, dk]
        # accumulate output projection per head (no lane-axis concat).
        acc = acc + jnp.dot(hv.astype(jnp.bfloat16), wo_ref[lo:hi, :],
                            preferred_element_type=jnp.float32)

    o_ref[...] = (acc + bo_ref[0] + xq_f32).astype(o_ref.dtype)


# ----------------------------------------------------------------------------
# Tiling / VMEM budgeting helpers
# ----------------------------------------------------------------------------
def _estimate_vmem_bytes(seq, tq, C, Hdk):
    by = 2 * seq * C * 4            # x block (double-buffered, f32)
    by += 2 * tq * C * 4            # output block (double-buffered, f32)
    by += 2 * 3 * C * Hdk * 2       # wq / wk / wv (bf16)
    by += 2 * Hdk * C * 2           # wo (bf16)
    by += 2 * (3 * Hdk + C) * 4     # biases (f32)
    by += 2 * seq * Hdk * 2         # K / V scratch (bf16)
    # in-kernel temporaries: scores/probs, q, head outputs, accumulator.
    by += 3 * tq * seq * 4 + 4 * tq * Hdk * 4 + 2 * tq * C * 4
    return by


def _pick_q_tile(seq, C, Hdk, budget=40 << 20):
    tq = seq
    for cand in (512, 256, 128, 64, 32, 16, 8):
        if seq % cand == 0:
            tq = cand
            break
    # Shrink the q-tile until the VMEM estimate fits the budget (v7x = 64 MiB
    # physical, so we stay well under 48 MiB scoped).
    while (_estimate_vmem_bytes(seq, tq, C, Hdk) > budget
           and tq >= 16 and tq % 2 == 0 and seq % (tq // 2) == 0):
        tq //= 2
    return tq


# ----------------------------------------------------------------------------
# Wrapper
# ----------------------------------------------------------------------------
def attention_block(x, w_qkv, b_qkv, w_out, b_out, *, n_heads, d_k):
    """x: [B, C, H, W] float32. Weights in PyTorch Linear layout:
       w_qkv: [n_heads*3*d_k, C], b_qkv: [n_heads*3*d_k]
       w_out: [C, n_heads*d_k],   b_out: [C]
    """
    B, C, H, W = x.shape
    seq = H * W
    Hdk = n_heads * d_k
    scale = float(d_k) ** -0.5

    # Glue: NCHW -> [B, seq, C] (channel-last so C sits on the lane axis).
    # TODO(synk): in a full model this transpose should be fused into the
    # producing op rather than paid as a standalone HBM round trip.
    x_flat = jnp.transpose(x.reshape(B, C, seq), (0, 2, 1)).astype(jnp.float32)

    # Split the fused QKV projection into head-contiguous Q / K / V weights so
    # per-head slices inside the kernel are simple d_k-wide blocks, fold the
    # softmax scale into the Q projection, and cast matmul weights to bf16.
    w3 = w_qkv.reshape(n_heads, 3, d_k, C)
    b3 = b_qkv.reshape(n_heads, 3, d_k)
    wq = (w3[:, 0].reshape(Hdk, C).T * scale).astype(jnp.bfloat16)   # [C, Hdk]
    wk = w3[:, 1].reshape(Hdk, C).T.astype(jnp.bfloat16)             # [C, Hdk]
    wv = w3[:, 2].reshape(Hdk, C).T.astype(jnp.bfloat16)             # [C, Hdk]
    bq = (b3[:, 0].reshape(1, Hdk) * scale).astype(jnp.float32)
    bk = b3[:, 1].reshape(1, Hdk).astype(jnp.float32)
    bv = b3[:, 2].reshape(1, Hdk).astype(jnp.float32)
    wo = w_out.T.astype(jnp.bfloat16)                                # [Hdk, C]
    bo = b_out.reshape(1, C).astype(jnp.float32)

    tq = _pick_q_tile(seq, C, Hdk)
    n_qt = seq // tq
    est = _estimate_vmem_bytes(seq, tq, C, Hdk)
    vmem_limit = int(min(max(2 * est, 32 << 20), 48 << 20))

    kernel = functools.partial(_attention_kernel,
                               n_heads=n_heads, d_k=d_k, tq=tq)

    const = lambda b, qi: (0, 0)
    out_flat = pl.pallas_call(
        kernel,
        out_shape=jax.ShapeDtypeStruct((B, seq, C), jnp.float32),
        grid=(B, n_qt),
        in_specs=[
            # x: full sequence of the current batch element, resident across
            # all q-tiles of that element (block index changes only with b).
            pl.BlockSpec((None, seq, C), lambda b, qi: (b, 0, 0)),
            pl.BlockSpec((C, Hdk), const),    # wq (bf16, scale folded)
            pl.BlockSpec((C, Hdk), const),    # wk
            pl.BlockSpec((C, Hdk), const),    # wv
            pl.BlockSpec((1, Hdk), const),    # bq
            pl.BlockSpec((1, Hdk), const),    # bk
            pl.BlockSpec((1, Hdk), const),    # bv
            pl.BlockSpec((Hdk, C), const),    # wo
            pl.BlockSpec((1, C), const),      # bo
        ],
        out_specs=pl.BlockSpec((None, tq, C), lambda b, qi: (b, qi, 0)),
        scratch_shapes=[
            pltpu.VMEM((seq, Hdk), jnp.bfloat16),   # K, whole sequence
            pltpu.VMEM((seq, Hdk), jnp.bfloat16),   # V, whole sequence
        ],
        compiler_params=pltpu.CompilerParams(
            # Batch axis is independent (megacore-splittable on v7x); the
            # q-tile axis carries the resident K/V scratch -> "arbitrary".
            dimension_semantics=("parallel", "arbitrary"),
            vmem_limit_bytes=vmem_limit,
        ),
    )(x_flat, wq, wk, wv, bq, bk, bv, wo, bo)

    # Glue: [B, seq, C] -> NCHW
    return jnp.transpose(out_flat, (0, 2, 1)).reshape(B, C, H, W)


# ----------------------------------------------------------------------------
# Pure-JAX reference (mirrors the PyTorch forward, all f32)
# ----------------------------------------------------------------------------
def _reference(x, w_qkv, b_qkv, w_out, b_out, *, n_heads, d_k):
    B, C, H, W = x.shape
    seq = H * W
    scale = float(d_k) ** -0.5
    xf = jnp.transpose(x.reshape(B, C, seq), (0, 2, 1))           # [B, seq, C]
    qkv = xf @ w_qkv.T + b_qkv                                    # [B, seq, H*3dk]
    qkv = qkv.reshape(B, seq, n_heads, 3 * d_k)
    q, k, v = jnp.split(qkv, 3, axis=-1)
    attn = jnp.einsum('bihd,bjhd->bijh', q, k) * scale
    attn = jax.nn.softmax(attn, axis=2)
    res = jnp.einsum('bijh,bjhd->bihd', attn, v).reshape(B, seq, n_heads * d_k)
    res = res @ w_out.T + b_out + xf
    return jnp.transpose(res, (0, 2, 1)).reshape(B, C, H, W)


# ----------------------------------------------------------------------------
# Demo / correctness check
# ----------------------------------------------------------------------------
if __name__ == "__main__":
    def run_case(case_idx, B, C, H, W, n_heads, d_k):
        key = jax.random.fold_in(jax.random.PRNGKey(0), case_idx)
        k1, k2, k3, k4, k5 = jax.random.split(key, 5)
        x = jax.random.normal(k1, (B, C, H, W), dtype=jnp.float32)
        # PyTorch Linear layout [out, in].
        w_qkv = 0.05 * jax.random.normal(k2, (n_heads * 3 * d_k, C), dtype=jnp.float32)
        b_qkv = 0.05 * jax.random.normal(k3, (n_heads * 3 * d_k,), dtype=jnp.float32)
        w_out = 0.05 * jax.random.normal(k4, (C, n_heads * d_k), dtype=jnp.float32)
        b_out = 0.05 * jax.random.normal(k5, (C,), dtype=jnp.float32)

        out = attention_block(x, w_qkv, b_qkv, w_out, b_out,
                              n_heads=n_heads, d_k=d_k)
        out = jax.block_until_ready(out)

        ref = _reference(x, w_qkv, b_qkv, w_out, b_out, n_heads=n_heads, d_k=d_k)
        assert out.shape == (B, C, H, W)
        max_err = float(jnp.max(jnp.abs(out - ref)))
        # bf16 matmul operands + approx reciprocal -> loosened tolerance.
        assert jnp.allclose(out, ref, atol=2e-2, rtol=2e-2), \
            f"mismatch vs reference (max abs err {max_err:.3e})"

    # Module defaults: n_heads=1, d_k=n_channels.
    run_case(0, B=2, C=32, H=8, W=8, n_heads=1, d_k=32)
    # Multi-head config exercising the per-head output-projection accumulation.
    run_case(1, B=2, C=64, H=8, W=8, n_heads=2, d_k=32)

    print("KERNEL_OK")
</pallas_src>

<mosaic_0001>
module attributes {stable_mosaic.version = 11 : i64} {
  func.func @_attention_kernel(%arg0: i32, %arg1: i32, %arg2: memref<1x64x32xf32, #tpu.memory_space<vmem>>, %arg3: memref<32x32xbf16, #tpu.memory_space<vmem>>, %arg4: memref<32x32xbf16, #tpu.memory_space<vmem>>, %arg5: memref<32x32xbf16, #tpu.memory_space<vmem>>, %arg6: memref<1x32xf32, #tpu.memory_space<vmem>>, %arg7: memref<1x32xf32, #tpu.memory_space<vmem>>, %arg8: memref<1x32xf32, #tpu.memory_space<vmem>>, %arg9: memref<32x32xbf16, #tpu.memory_space<vmem>>, %arg10: memref<1x32xf32, #tpu.memory_space<vmem>>, %arg11: memref<1x64x32xf32, #tpu.memory_space<vmem>>, %arg12: memref<64x32xbf16, #tpu.memory_space<vmem>>, %arg13: memref<64x32xbf16, #tpu.memory_space<vmem>>) attributes {dimension_semantics = [#tpu.dimension_semantics<parallel>, #tpu.dimension_semantics<arbitrary>], iteration_bounds = array<i64: 2, 1>, scalar_prefetch = 0 : i64, scratch_operands = 2 : i64, tpu.core_type = #tpu.core_type<tc>, window_params = [{transform_indices = @transform_0, window_bounds = array<i64: 1, 64, 32>}, {pipeline_mode = #tpu.pipeline_mode<synchronous>, transform_indices = @transform_1, window_bounds = array<i64: 32, 32>}, {pipeline_mode = #tpu.pipeline_mode<synchronous>, transform_indices = @transform_2, window_bounds = array<i64: 32, 32>}, {pipeline_mode = #tpu.pipeline_mode<synchronous>, transform_indices = @transform_3, window_bounds = array<i64: 32, 32>}, {pipeline_mode = #tpu.pipeline_mode<synchronous>, transform_indices = @transform_4, window_bounds = array<i64: 1, 32>}, {pipeline_mode = #tpu.pipeline_mode<synchronous>, transform_indices = @transform_5, window_bounds = array<i64: 1, 32>}, {pipeline_mode = #tpu.pipeline_mode<synchronous>, transform_indices = @transform_6, window_bounds = array<i64: 1, 32>}, {pipeline_mode = #tpu.pipeline_mode<synchronous>, transform_indices = @transform_7, window_bounds = array<i64: 32, 32>}, {pipeline_mode = #tpu.pipeline_mode<synchronous>, transform_indices = @transform_8, window_bounds = array<i64: 1, 32>}, {transform_indices = @transform_9, window_bounds = array<i64: 1, 64, 32>}]} {
    %c0_i32 = arith.constant 0 : i32
    %0 = arith.cmpi eq, %arg1, %c0_i32 : i32
    %1 = arith.extui %0 : i1 to i32
    %c0_i32_0 = arith.constant 0 : i32
    %2 = arith.cmpi ne, %1, %c0_i32_0 : i32
    scf.if %2 {
      %c0_23 = arith.constant 0 : index
      %c0_24 = arith.constant 0 : index
      %c0_25 = arith.constant 0 : index
      %46 = vector.load %arg2[%c0_23, %c0_24, %c0_25] : memref<1x64x32xf32, #tpu.memory_space<vmem>>, vector<1x64x32xf32>
      %47 = vector.shape_cast %46 : vector<1x64x32xf32> to vector<64x32xf32>
      %48 = arith.truncf %47 : vector<64x32xf32> to vector<64x32xbf16>
      %c0_26 = arith.constant 0 : index
      %c0_27 = arith.constant 0 : index
      %49 = vector.load %arg4[%c0_26, %c0_27] : memref<32x32xbf16, #tpu.memory_space<vmem>>, vector<32x32xbf16>
      %cst_28 = arith.constant dense<0.000000e+00> : vector<64x32xf32>
      %50 = tpu.matmul %48, %49, %cst_28 {dimension_numbers = #tpu.dot_dimension_numbers<[1], [0], [0], [1], [0, 0, 1, 1], [], []>} : vector<64x32xbf16>, vector<32x32xbf16>, vector<64x32xf32> -> vector<64x32xf32>
      %c0_29 = arith.constant 0 : index
      %c0_30 = arith.constant 0 : index
      %51 = vector.load %arg7[%c0_29, %c0_30] : memref<1x32xf32, #tpu.memory_space<vmem>>, vector<1x32xf32>
      %52 = vector.shape_cast %51 : vector<1x32xf32> to vector<32xf32>
      %53 = vector.shape_cast %52 : vector<32xf32> to vector<1x32xf32>
      %54 = vector.broadcast %53 : vector<1x32xf32> to vector<64x32xf32>
      %55 = arith.addf %50, %54 : vector<64x32xf32>
      %c0_31 = arith.constant 0 : index
      %c0_32 = arith.constant 0 : index
      %56 = vector.load %arg5[%c0_31, %c0_32] : memref<32x32xbf16, #tpu.memory_space<vmem>>, vector<32x32xbf16>
      %cst_33 = arith.constant dense<0.000000e+00> : vector<64x32xf32>
      %57 = tpu.matmul %48, %56, %cst_33 {dimension_numbers = #tpu.dot_dimension_numbers<[1], [0], [0], [1], [0, 0, 1, 1], [], []>} : vector<64x32xbf16>, vector<32x32xbf16>, vector<64x32xf32> -> vector<64x32xf32>
      %c0_34 = arith.constant 0 : index
      %c0_35 = arith.constant 0 : index
      %58 = vector.load %arg8[%c0_34, %c0_35] : memref<1x32xf32, #tpu.memory_space<vmem>>, vector<1x32xf32>
      %59 = vector.shape_cast %58 : vector<1x32xf32> to vector<32xf32>
      %60 = vector.shape_cast %59 : vector<32xf32> to vector<1x32xf32>
      %61 = vector.broadcast %60 : vector<1x32xf32> to vector<64x32xf32>
      %62 = arith.addf %57, %61 : vector<64x32xf32>
      %63 = arith.truncf %55 : vector<64x32xf32> to vector<64x32xbf16>
      %c0_36 = arith.constant 0 : index
      %c0_37 = arith.constant 0 : index
      %64 = vector.load %arg12[%c0_36, %c0_37] : memref<64x32xbf16, #tpu.memory_space<vmem>>, vector<64x32xbf16>
      tpu.vector_store %arg12[%c0_36, %c0_37], %63 {strides = array<i32>} : memref<64x32xbf16, #tpu.memory_space<vmem>>, vector<64x32xbf16>,
      %65 = arith.truncf %62 : vector<64x32xf32> to vector<64x32xbf16>
      %c0_38 = arith.constant 0 : index
      %c0_39 = arith.constant 0 : index
      %66 = vector.load %arg13[%c0_38, %c0_39] : memref<64x32xbf16, #tpu.memory_space<vmem>>, vector<64x32xbf16>
      tpu.vector_store %arg13[%c0_38, %c0_39], %65 {strides = array<i32>} : memref<64x32xbf16, #tpu.memory_space<vmem>>, vector<64x32xbf16>,
    } else {
    }
    %c64_i32 = arith.constant 64 : i32
    %3 = arith.muli %arg1, %c64_i32 : i32
    %4 = tpu.assume_multiple %3, 8 : i32
    %c0 = arith.constant 0 : index
    %5 = arith.index_cast %4 : i32 to index
    %c0_1 = arith.constant 0 : index
    %6 = vector.load %arg2[%c0, %5, %c0_1] : memref<1x64x32xf32, #tpu.memory_space<vmem>>, vector<1x64x32xf32>
    %7 = vector.shape_cast %6 : vector<1x64x32xf32> to vector<64x32xf32>
    %8 = arith.truncf %7 : vector<64x32xf32> to vector<64x32xbf16>
    %c0_2 = arith.constant 0 : index
    %c0_3 = arith.constant 0 : index
    %9 = vector.load %arg3[%c0_2, %c0_3] : memref<32x32xbf16, #tpu.memory_space<vmem>>, vector<32x32xbf16>
    %cst = arith.constant dense<0.000000e+00> : vector<64x32xf32>
    %10 = tpu.matmul %8, %9, %cst {dimension_numbers = #tpu.dot_dimension_numbers<[1], [0], [0], [1], [0, 0, 1, 1], [], []>} : vector<64x32xbf16>, vector<32x32xbf16>, vector<64x32xf32> -> vector<64x32xf32>
    %c0_4 = arith.constant 0 : index
    %c0_5 = arith.constant 0 : index
    %11 = vector.load %arg6[%c0_4, %c0_5] : memref<1x32xf32, #tpu.memory_space<vmem>>, vector<1x32xf32>
    %12 = vector.shape_cast %11 : vector<1x32xf32> to vector<32xf32>
    %13 = vector.shape_cast %12 : vector<32xf32> to vector<1x32xf32>
    %14 = vector.broadcast %13 : vector<1x32xf32> to vector<64x32xf32>
    %15 = arith.addf %10, %14 : vector<64x32xf32>
    %16 = arith.truncf %15 : vector<64x32xf32> to vector<64x32xbf16>
    %cst_6 = arith.constant 0.000000e+00 : f32
    %17 = vector.broadcast %cst_6 : f32 to vector<64x32xf32>
    %c0_7 = arith.constant 0 : index
    %c0_8 = arith.constant 0 : index
    %18 = vector.load %arg12[%c0_7, %c0_8] : memref<64x32xbf16, #tpu.memory_space<vmem>>, vector<64x32xbf16>
    %c0_9 = arith.constant 0 : index
    %c0_10 = arith.constant 0 : index
    %19 = vector.load %arg13[%c0_9, %c0_10] : memref<64x32xbf16, #tpu.memory_space<vmem>>, vector<64x32xbf16>
    %cst_11 = arith.constant dense<0.000000e+00> : vector<64x64xf32>
    %20 = tpu.matmul %16, %18, %cst_11 {dimension_numbers = #tpu.dot_dimension_numbers<[1], [1], [0], [0], [0, 0, 1, 0], [], []>} : vector<64x32xbf16>, vector<64x32xbf16>, vector<64x64xf32> -> vector<64x64xf32>
    %cst_12 = arith.constant dense<0xFF800000> : vector<64xf32>
    %21 = vector.multi_reduction <maximumf>, %20, %cst_12 [1] : vector<64x64xf32> to vector<64xf32>
    %22 = vector.shape_cast %21 : vector<64xf32> to vector<64x1xf32>
    %23 = vector.broadcast %22 : vector<64x1xf32> to vector<64x64xf32>
    %24 = arith.subf %20, %23 : vector<64x64xf32>
    %25 = math.exp %24 : vector<64x64xf32>
    %cst_13 = arith.constant dense<0.000000e+00> : vector<64xf32>
    %26 = vector.multi_reduction <add>, %25, %cst_13 [1] : vector<64x64xf32> to vector<64xf32>
    %27 = vector.shape_cast %26 : vector<64xf32> to vector<64x1xf32>
    %28 = tpu.reciprocal %27 {approx = true} : vector<64x1xf32> -> vector<64x1xf32>
    %29 = vector.broadcast %28 : vector<64x1xf32> to vector<64x64xf32>
    %30 = arith.mulf %25, %29 : vector<64x64xf32>
    %31 = arith.truncf %30 : vector<64x64xf32> to vector<64x64xbf16>
    %cst_14 = arith.constant dense<0.000000e+00> : vector<64x32xf32>
    %32 = tpu.matmul %31, %19, %cst_14 {dimension_numbers = #tpu.dot_dimension_numbers<[1], [0], [0], [1], [0, 0, 1, 1], [], []>} : vector<64x64xbf16>, vector<64x32xbf16>, vector<64x32xf32> -> vector<64x32xf32>
    %33 = arith.truncf %32 : vector<64x32xf32> to vector<64x32xbf16>
    %c0_15 = arith.constant 0 : index
    %c0_16 = arith.constant 0 : index
    %34 = vector.load %arg9[%c0_15, %c0_16] : memref<32x32xbf16, #tpu.memory_space<vmem>>, vector<32x32xbf16>
    %cst_17 = arith.constant dense<0.000000e+00> : vector<64x32xf32>
    %35 = tpu.matmul %33, %34, %cst_17 {dimension_numbers = #tpu.dot_dimension_numbers<[1], [0], [0], [1], [0, 0, 1, 1], [], []>} : vector<64x32xbf16>, vector<32x32xbf16>, vector<64x32xf32> -> vector<64x32xf32>
    %36 = arith.addf %17, %35 : vector<64x32xf32>
    %c0_18 = arith.constant 0 : index
    %c0_19 = arith.constant 0 : index
    %37 = vector.load %arg10[%c0_18, %c0_19] : memref<1x32xf32, #tpu.memory_space<vmem>>, vector<1x32xf32>
    %38 = vector.shape_cast %37 : vector<1x32xf32> to vector<32xf32>
    %39 = vector.shape_cast %38 : vector<32xf32> to vector<1x32xf32>
    %40 = vector.broadcast %39 : vector<1x32xf32> to vector<64x32xf32>
    %41 = arith.addf %36, %40 : vector<64x32xf32>
    %42 = arith.addf %41, %7 : vector<64x32xf32>
    %c0_20 = arith.constant 0 : index
    %c0_21 = arith.constant 0 : index
    %c0_22 = arith.constant 0 : index
    %43 = vector.load %arg11[%c0_20, %c0_21, %c0_22] : memref<1x64x32xf32, #tpu.memory_space<vmem>>, vector<1x64x32xf32>
    %44 = vector.shape_cast %43 : vector<1x64x32xf32> to vector<64x32xf32>
    %45 = vector.shape_cast %42 : vector<64x32xf32> to vector<1x64x32xf32>
    tpu.vector_store %arg11[%c0_20, %c0_21, %c0_22], %45 {strides = array<i32>} : memref<1x64x32xf32, #tpu.memory_space<vmem>>, vector<1x64x32xf32>,
    return
  }
  func.func @transform_0(%arg0: i32, %arg1: i32) -> (i32, i32, i32) {
    %c0_i32 = arith.constant 0 : i32
    %c0_i32_0 = arith.constant 0 : i32
    %c0_i32_1 = arith.constant 0 : i32
    return %arg0, %c0_i32, %c0_i32_0 : i32, i32, i32
  }
  func.func @transform_1(%arg0: i32, %arg1: i32) -> (i32, i32) {
    %c0_i32 = arith.constant 0 : i32
    %c0_i32_0 = arith.constant 0 : i32
    %c0_i32_1 = arith.constant 0 : i32
    return %c0_i32, %c0_i32_0 : i32, i32
  }
  func.func @transform_2(%arg0: i32, %arg1: i32) -> (i32, i32) {
    %c0_i32 = arith.constant 0 : i32
    %c0_i32_0 = arith.constant 0 : i32
    %c0_i32_1 = arith.constant 0 : i32
    return %c0_i32, %c0_i32_0 : i32, i32
  }
  func.func @transform_3(%arg0: i32, %arg1: i32) -> (i32, i32) {
    %c0_i32 = arith.constant 0 : i32
    %c0_i32_0 = arith.constant 0 : i32
    %c0_i32_1 = arith.constant 0 : i32
    return %c0_i32, %c0_i32_0 : i32, i32
  }
  func.func @transform_4(%arg0: i32, %arg1: i32) -> (i32, i32) {
    %c0_i32 = arith.constant 0 : i32
    %c0_i32_0 = arith.constant 0 : i32
    %c0_i32_1 = arith.constant 0 : i32
    return %c0_i32, %c0_i32_0 : i32, i32
  }
  func.func @transform_5(%arg0: i32, %arg1: i32) -> (i32, i32) {
    %c0_i32 = arith.constant 0 : i32
    %c0_i32_0 = arith.constant 0 : i32
    %c0_i32_1 = arith.constant 0 : i32
    return %c0_i32, %c0_i32_0 : i32, i32
  }
  func.func @transform_6(%arg0: i32, %arg1: i32) -> (i32, i32) {
    %c0_i32 = arith.constant 0 : i32
    %c0_i32_0 = arith.constant 0 : i32
    %c0_i32_1 = arith.constant 0 : i32
    return %c0_i32, %c0_i32_0 : i32, i32
  }
  func.func @transform_7(%arg0: i32, %arg1: i32) -> (i32, i32) {
    %c0_i32 = arith.constant 0 : i32
    %c0_i32_0 = arith.constant 0 : i32
    %c0_i32_1 = arith.constant 0 : i32
    return %c0_i32, %c0_i32_0 : i32, i32
  }
  func.func @transform_8(%arg0: i32, %arg1: i32) -> (i32, i32) {
    %c0_i32 = arith.constant 0 : i32
    %c0_i32_0 = arith.constant 0 : i32
    %c0_i32_1 = arith.constant 0 : i32
    return %c0_i32, %c0_i32_0 : i32, i32
  }
  func.func @transform_9(%arg0: i32, %arg1: i32) -> (i32, i32, i32) {
    %c0_i32 = arith.constant 0 : i32
    %c0_i32_0 = arith.constant 0 : i32
    return %arg0, %arg1, %c0_i32 : i32, i32, i32
  }
}

</mosaic_0001>

<llo_original>
// kernel: tpu_custom_call.1
$region0: #{tpu_custom_call.1}
  #allocation0 [shape = 'u32[]', space=smem, size = 0x4, offset = 0x4, fixed_abs, tag = 'smem constant byte address 0x4 - core index']
  #allocation1 [shape = 'u32[72,128]{1,0:T(1,128)}', space=vmem, size = 0x9000, scoped, tag = 'internal scratch']
  #allocation2 [shape = 'bf16[64,32]{1,0:T(8,128)(2,1)}', space=vmem, size = 0x4000, scoped, tag = 'scratch operand']
  #allocation3 [shape = 'bf16[64,32]{1,0:T(8,128)(2,1)}', space=vmem, size = 0x4000, scoped, tag = 'scratch operand']
  %s0 = inlined_call_operand.vmem [shape: f32[2,64,32], index: 0, kind: input, shape index: {}]
  %s1 = inlined_call_operand.vmem [shape: bf16[32,32], index: 1, kind: input, shape index: {}]
  %s2 = inlined_call_operand.vmem [shape: bf16[32,32], index: 2, kind: input, shape index: {}]
  %s3 = inlined_call_operand.vmem [shape: bf16[32,32], index: 3, kind: input, shape index: {}]
  %s4 = inlined_call_operand.vmem [shape: f32[1,32], index: 4, kind: input, shape index: {}]
  %s5 = inlined_call_operand.vmem [shape: f32[1,32], index: 5, kind: input, shape index: {}]
  %s6 = inlined_call_operand.vmem [shape: f32[1,32], index: 6, kind: input, shape index: {}]
  %s7 = inlined_call_operand.vmem [shape: bf16[32,32], index: 7, kind: input, shape index: {}]
  %s8 = inlined_call_operand.vmem [shape: f32[1,32], index: 8, kind: input, shape index: {}]
  %s9 = inlined_call_operand.vmem [shape: f32[2,64,32], index: 9, kind: output, shape index: {}]
  %s10 = sld [smem:[#allocation0]]
  $region73: #{tpu_custom_call.1} parent=0
    _
  %s12 = ssub.s32 1, %s10
  %s13 = scalar_select 0, %s12, %s10
  loop: start=0, step=1, limit=4
  $region2: #{tpu_custom_call.1} parent=0 // loop_pre_header
    _
  $region3: #{tpu_custom_call.1} parent=0 // loop_header
    %s15 = sphi 0, %s19
    %p16 = scmp.ge.s32.totalorder %s15, 4
    %s22 = sphi 0, %s34
    %s23 = sphi 0, %s30
    %s24 = sphi 0, %s22
    %s25 = sphi 0, %s23
    %s26 = sphi 0, %s24
    %s27 = sphi 0, %s25
    %s37 = sphi 0, %s39
    %s40 = sphi 0, %s37
    %s41 = sphi 0, %s40
    %s57 = sphi 0, %s41
    %s61 = sphi 0, %s61
    %s63 = sphi 0, %s61
    %s64 = sphi 0, %s63
    %s78 = sphi 0, %s64
    %s82 = sphi 0, %s82
    %s84 = sphi 0, %s82
    %s85 = sphi 0, %s84
    %s99 = sphi 0, %s85
    %s103 = sphi 0, %s103
    %s105 = sphi 0, %s103
    %s106 = sphi 0, %s105
    %s120 = sphi 0, %s106
    %s124 = sphi 0, %s124
    %s126 = sphi 0, %s124
    %s127 = sphi 0, %s126
    %s141 = sphi 0, %s127
    %s145 = sphi 0, %s145
    %s147 = sphi 0, %s145
    %s148 = sphi 0, %s147
    %s162 = sphi 0, %s148
    %s166 = sphi 0, %s166
    %s168 = sphi 0, %s166
    %s169 = sphi 0, %s168
    %s183 = sphi 0, %s169
    %s187 = sphi 0, %s187
    %s189 = sphi 0, %s187
    %s190 = sphi 0, %s189
    %s204 = sphi 0, %s190
    %s208 = sphi 0, %s208
    %s210 = sphi 0, %s208
    %s211 = sphi 0, %s210
    %s225 = sphi 0, %s211
    %s233 = sphi 0, %s235
    %s236 = sphi 0, %s233
    %s237 = sphi 0, %s236
    %s253 = sphi 0, %s237
  $region4: #{tpu_custom_call.1} parent=0 // loop_header_branch
    %18 = sbr.rel (%p16) target = $region8
  $region5: #{tpu_custom_call.1} parent=0 // loop_body
    %s20 = ssub.s32 %s15, 1
    %s21 = ssub.s32 %s15, 2
    %s28 = sadd.s32 1, %s23
    %p29 = scmp.ge.s32.totalorder %s28, 1
    %s30 = scalar_select %p29, 0, %s28
    %s31 = sadd.s32 1, %s22
    %s32 = scalar_select %p29, %s31, %s22
    %p33 = scmp.ge.s32.totalorder %s32, 2
    %s34 = scalar_select %p33, 0, %s32
    %s35 = ssub.s32 %s22, %s34
    %p36 = scmp.eq.s32.totalorder %s35, 0
    %s38 = sadd.s32 %s37, 1
    %s39 = scalar_select %p36, %s37, %s38
    %p42 = pneg %p36
    %p43 = scmp.eq.s32.totalorder %s15, 1
    %p44 = por %p42, %p43
    %p45 = scmp.ne.s32.totalorder %s37, %s40
    %p46 = scmp.eq.s32.totalorder %s15, 0
    %p47 = por %p45, %p46
    %p48 = scmp.ne.s32.totalorder %s37, %s40
    %p49 = scmp.eq.s32.totalorder %s20, 1
    %p50 = por %p48, %p49
    %p51 = scmp.ne.s32.totalorder %s40, %s41
    %p52 = scmp.eq.s32.totalorder %s20, 0
    %p53 = por %p51, %p52
    %p54 = scmp.ne.s32.totalorder %s40, %s41
    %p55 = scmp.eq.s32.totalorder %s21, 1
    %p56 = por %p54, %p55
    %p58 = scmp.ne.s32.totalorder %s41, %s57
    %p59 = scmp.eq.s32.totalorder %s21, 0
    %p60 = por %p58, %p59
    %s62 = sadd.s32 %s61, 1
    %p65 = scmp.eq.s32.totalorder %s15, 1
    %p66 = scmp.ne.s32.totalorder %s61, %s63
    %p67 = scmp.eq.s32.totalorder %s15, 0
    %p68 = por %p66, %p67
    %p69 = scmp.ne.s32.totalorder %s61, %s63
    %p70 = scmp.eq.s32.totalorder %s20, 1
    %p71 = por %p69, %p70
    %p72 = scmp.ne.s32.totalorder %s63, %s64
    %p73 = scmp.eq.s32.totalorder %s20, 0
    %p74 = por %p72, %p73
    %p75 = scmp.ne.s32.totalorder %s63, %s64
    %p76 = scmp.eq.s32.totalorder %s21, 1
    %p77 = por %p75, %p76
    %p79 = scmp.ne.s32.totalorder %s64, %s78
    %p80 = scmp.eq.s32.totalorder %s21, 0
    %p81 = por %p79, %p80
    %s83 = sadd.s32 %s82, 1
    %p86 = scmp.eq.s32.totalorder %s15, 1
    %p87 = scmp.ne.s32.totalorder %s82, %s84
    %p88 = scmp.eq.s32.totalorder %s15, 0
    %p89 = por %p87, %p88
    %p90 = scmp.ne.s32.totalorder %s82, %s84
    %p91 = scmp.eq.s32.totalorder %s20, 1
    %p92 = por %p90, %p91
    %p93 = scmp.ne.s32.totalorder %s84, %s85
    %p94 = scmp.eq.s32.totalorder %s20, 0
    %p95 = por %p93, %p94
    %p96 = scmp.ne.s32.totalorder %s84, %s85
    %p97 = scmp.eq.s32.totalorder %s21, 1
    %p98 = por %p96, %p97
    %p100 = scmp.ne.s32.totalorder %s85, %s99
    %p101 = scmp.eq.s32.totalorder %s21, 0
    %p102 = por %p100, %p101
    %s104 = sadd.s32 %s103, 1
    %p107 = scmp.eq.s32.totalorder %s15, 1
    %p108 = scmp.ne.s32.totalorder %s103, %s105
    %p109 = scmp.eq.s32.totalorder %s15, 0
    %p110 = por %p108, %p109
    %p111 = scmp.ne.s32.totalorder %s103, %s105
    %p112 = scmp.eq.s32.totalorder %s20, 1
    %p113 = por %p111, %p112
    %p114 = scmp.ne.s32.totalorder %s105, %s106
    %p115 = scmp.eq.s32.totalorder %s20, 0
    %p116 = por %p114, %p115
    %p117 = scmp.ne.s32.totalorder %s105, %s106
    %p118 = scmp.eq.s32.totalorder %s21, 1
    %p119 = por %p117, %p118
    %p121 = scmp.ne.s32.totalorder %s106, %s120
    %p122 = scmp.eq.s32.totalorder %s21, 0
    %p123 = por %p121, %p122
    %s125 = sadd.s32 %s124, 1
    %p128 = scmp.eq.s32.totalorder %s15, 1
    %p129 = scmp.ne.s32.totalorder %s124, %s126
    %p130 = scmp.eq.s32.totalorder %s15, 0
    %p131 = por %p129, %p130
    %p132 = scmp.ne.s32.totalorder %s124, %s126
    %p133 = scmp.eq.s32.totalorder %s20, 1
    %p134 = por %p132, %p133
    %p135 = scmp.ne.s32.totalorder %s126, %s127
    %p136 = scmp.eq.s32.totalorder %s20, 0
    %p137 = por %p135, %p136
    %p138 = scmp.ne.s32.totalorder %s126, %s127
    %p139 = scmp.eq.s32.totalorder %s21, 1
    %p140 = por %p138, %p139
    %p142 = scmp.ne.s32.totalorder %s127, %s141
    %p143 = scmp.eq.s32.totalorder %s21, 0
    %p144 = por %p142, %p143
    %s146 = sadd.s32 %s145, 1
    %p149 = scmp.eq.s32.totalorder %s15, 1
    %p150 = scmp.ne.s32.totalorder %s145, %s147
    %p151 = scmp.eq.s32.totalorder %s15, 0
    %p152 = por %p150, %p151
    %p153 = scmp.ne.s32.totalorder %s145, %s147
    %p154 = scmp.eq.s32.totalorder %s20, 1
    %p155 = por %p153, %p154
    %p156 = scmp.ne.s32.totalorder %s147, %s148
    %p157 = scmp.eq.s32.totalorder %s20, 0
    %p158 = por %p156, %p157
    %p159 = scmp.ne.s32.totalorder %s147, %s148
    %p160 = scmp.eq.s32.totalorder %s21, 1
    %p161 = por %p159, %p160
    %p163 = scmp.ne.s32.totalorder %s148, %s162
    %p164 = scmp.eq.s32.totalorder %s21, 0
    %p165 = por %p163, %p164
    %s167 = sadd.s32 %s166, 1
    %p170 = scmp.eq.s32.totalorder %s15, 1
    %p171 = scmp.ne.s32.totalorder %s166, %s168
    %p172 = scmp.eq.s32.totalorder %s15, 0
    %p173 = por %p171, %p172
    %p174 = scmp.ne.s32.totalorder %s166, %s168
    %p175 = scmp.eq.s32.totalorder %s20, 1
    %p176 = por %p174, %p175
    %p177 = scmp.ne.s32.totalorder %s168, %s169
    %p178 = scmp.eq.s32.totalorder %s20, 0
    %p179 = por %p177, %p178
    %p180 = scmp.ne.s32.totalorder %s168, %s169
    %p181 = scmp.eq.s32.totalorder %s21, 1
    %p182 = por %p180, %p181
    %p184 = scmp.ne.s32.totalorder %s169, %s183
    %p185 = scmp.eq.s32.totalorder %s21, 0
    %p186 = por %p184, %p185
    %s188 = sadd.s32 %s187, 1
    %p191 = scmp.eq.s32.totalorder %s15, 1
    %p192 = scmp.ne.s32.totalorder %s187, %s189
    %p193 = scmp.eq.s32.totalorder %s15, 0
    %p194 = por %p192, %p193
    %p195 = scmp.ne.s32.totalorder %s187, %s189
    %p196 = scmp.eq.s32.totalorder %s20, 1
    %p197 = por %p195, %p196
    %p198 = scmp.ne.s32.totalorder %s189, %s190
    %p199 = scmp.eq.s32.totalorder %s20, 0
    %p200 = por %p198, %p199
    %p201 = scmp.ne.s32.totalorder %s189, %s190
    %p202 = scmp.eq.s32.totalorder %s21, 1
    %p203 = por %p201, %p202
    %p205 = scmp.ne.s32.totalorder %s190, %s204
    %p206 = scmp.eq.s32.totalorder %s21, 0
    %p207 = por %p205, %p206
    %s209 = sadd.s32 %s208, 1
    %p212 = scmp.eq.s32.totalorder %s15, 1
    %p213 = scmp.ne.s32.totalorder %s208, %s210
    %p214 = scmp.eq.s32.totalorder %s15, 0
    %p215 = por %p213, %p214
    %p216 = scmp.ne.s32.totalorder %s208, %s210
    %p217 = scmp.eq.s32.totalorder %s20, 1
    %p218 = por %p216, %p217
    %p219 = scmp.ne.s32.totalorder %s210, %s211
    %p220 = scmp.eq.s32.totalorder %s20, 0
    %p221 = por %p219, %p220
    %p222 = scmp.ne.s32.totalorder %s210, %s211
    %p223 = scmp.eq.s32.totalorder %s21, 1
    %p224 = por %p222, %p223
    %p226 = scmp.ne.s32.totalorder %s211, %s225
    %p227 = scmp.eq.s32.totalorder %s21, 0
    %p228 = por %p226, %p227
    %s229 = ssub.s32 %s22, %s34
    %s230 = ssub.s32 %s23, %s30
    %s231 = sor.u32 %s229, %s230
    %p232 = scmp.eq.s32.totalorder %s231, 0
    %s234 = sadd.s32 %s233, 1
    %s235 = scalar_select %p232, %s233, %s234
    %p238 = pneg %p232
    %p239 = scmp.eq.s32.totalorder %s15, 1
    %p240 = por %p238, %p239
    %p241 = scmp.ne.s32.totalorder %s233, %s236
    %p242 = scmp.eq.s32.totalorder %s15, 0
    %p243 = por %p241, %p242
    %p244 = scmp.ne.s32.totalorder %s233, %s236
    %p245 = scmp.eq.s32.totalorder %s20, 1
    %p246 = por %p244, %p245
    %p247 = scmp.ne.s32.totalorder %s236, %s237
    %p248 = scmp.eq.s32.totalorder %s20, 0
    %p249 = por %p247, %p248
    %p250 = scmp.ne.s32.totalorder %s236, %s237
    %p251 = scmp.eq.s32.totalorder %s21, 1
    %p252 = por %p250, %p251
    %p254 = scmp.ne.s32.totalorder %s237, %s253
    %p255 = scmp.eq.s32.totalorder %s21, 0
    %p256 = por %p254, %p255
    %p257 = scmp.le.s32.totalorder 1, %s15
    %p258 = scmp.lt.s32.totalorder %s15, 3
    %p259 = pnand %p257, %p258
    %p260 = pneg %p259
    // Predicated region
    $region9: #{tpu_custom_call.1} parent=5 // pred_check
      _
    $region10: #{tpu_custom_call.1} parent=5 // pred_check_branch
      %262 = sbr.rel (%p259) target = $region12
    $region11: #{tpu_custom_call.1} parent=5 // pred_region
      %s263 = ssub.s32 %s15, 1
      // Predicated region
      $region13: #{tpu_custom_call.1} parent=11 // pred_check
        %p264 = pneg %p74
      $region14: #{tpu_custom_call.1} parent=11 // pred_check_branch
        %266 = sbr.rel (%p264) target = $region16
      $region15: #{tpu_custom_call.1} parent=11 // pred_region
        _
      $region16: #{tpu_custom_call.1} parent=11 // pred_fallthru
        _
      // Predicated region
      $region17: #{tpu_custom_call.1} parent=11 // pred_check
        %p267 = pneg %p95
      $region18: #{tpu_custom_call.1} parent=11 // pred_check_branch
        %269 = sbr.rel (%p267) target = $region20
      $region19: #{tpu_custom_call.1} parent=11 // pred_region
        _
      $region20: #{tpu_custom_call.1} parent=11 // pred_fallthru
        _
      // Predicated region
      $region21: #{tpu_custom_call.1} parent=11 // pred_check
        %p270 = pneg %p116
      $region22: #{tpu_custom_call.1} parent=11 // pred_check_branch
        %272 = sbr.rel (%p270) target = $region24
      $region23: #{tpu_custom_call.1} parent=11 // pred_region
        _
      $region24: #{tpu_custom_call.1} parent=11 // pred_fallthru
        _
      // Predicated region
      $region25: #{tpu_custom_call.1} parent=11 // pred_check
        %p273 = pneg %p137
      $region26: #{tpu_custom_call.1} parent=11 // pred_check_branch
        %275 = sbr.rel (%p273) target = $region28
      $region27: #{tpu_custom_call.1} parent=11 // pred_region
        _
      $region28: #{tpu_custom_call.1} parent=11 // pred_fallthru
        _
      // Predicated region
      $region29: #{tpu_custom_call.1} parent=11 // pred_check
        %p276 = pneg %p158
      $region30: #{tpu_custom_call.1} parent=11 // pred_check_branch
        %278 = sbr.rel (%p276) target = $region32
      $region31: #{tpu_custom_call.1} parent=11 // pred_region
        _
      $region32: #{tpu_custom_call.1} parent=11 // pred_fallthru
        _
      // Predicated region
      $region33: #{tpu_custom_call.1} parent=11 // pred_check
        %p279 = pneg %p179
      $region34: #{tpu_custom_call.1} parent=11 // pred_check_branch
        %281 = sbr.rel (%p279) target = $region36
      $region35: #{tpu_custom_call.1} parent=11 // pred_region
        _
      $region36: #{tpu_custom_call.1} parent=11 // pred_fallthru
        _
      // Predicated region
      $region37: #{tpu_custom_call.1} parent=11 // pred_check
        %p282 = pneg %p200
      $region38: #{tpu_custom_call.1} parent=11 // pred_check_branch
        %284 = sbr.rel (%p282) target = $region40
      $region39: #{tpu_custom_call.1} parent=11 // pred_region
        _
      $region40: #{tpu_custom_call.1} parent=11 // pred_fallthru
        _
      // Predicated region
      $region41: #{tpu_custom_call.1} parent=11 // pred_check
        %p285 = pneg %p221
      $region42: #{tpu_custom_call.1} parent=11 // pred_check_branch
        %287 = sbr.rel (%p285) target = $region44
      $region43: #{tpu_custom_call.1} parent=11 // pred_region
        _
      $region44: #{tpu_custom_call.1} parent=11 // pred_fallthru
        _
    $region12: #{tpu_custom_call.1} parent=5 // pred_fallthru
      _
    %p288 = scmp.lt.s32.totalorder %s15, 2
    // Predicated region
    $region45: #{tpu_custom_call.1} parent=5 // pred_check
      %p289 = pneg %p288
    $region46: #{tpu_custom_call.1} parent=5 // pred_check_branch
      %291 = sbr.rel (%p289) target = $region48
    $region47: #{tpu_custom_call.1} parent=5 // pred_region
      // Predicated region
      $region49: #{tpu_custom_call.1} parent=47 // pred_check
        %p292 = pneg %p47
      $region50: #{tpu_custom_call.1} parent=47 // pred_check_branch
        %294 = sbr.rel (%p292) target = $region52
      $region51: #{tpu_custom_call.1} parent=47 // pred_region
        %p295 = scmp.lt.s32.totalorder %s22, 1
        %s296 = scalar_select %p295, %s22, 1
        %s297 = smul.addr %s296, 8
        %s298 = smul.addr %s297, 8
        %s299 = scalar_lea.vmem %s0, %s298
      $region52: #{tpu_custom_call.1} parent=47 // pred_fallthru
        _
    $region48: #{tpu_custom_call.1} parent=5 // pred_fallthru
      _
    %p300 = scmp.le.s32.totalorder 1, %s15
    %p301 = scmp.lt.s32.totalorder %s15, 3
    %p302 = pnand %p300, %p301
    %p303 = pneg %p302
    // Predicated region
    $region53: #{tpu_custom_call.1} parent=5 // pred_check
      _
    $region54: #{tpu_custom_call.1} parent=5 // pred_check_branch
      %305 = sbr.rel (%p302) target = $region56
    $region55: #{tpu_custom_call.1} parent=5 // pred_region
      %s306 = ssub.s32 %s15, 1
      %p307 = scmp.lt.s32.totalorder %s24, 1
      %s308 = scalar_select %p307, %s24, 1
      %s309 = smul.addr %s308, 8
      %s310 = smul.addr %s309, 8
      %s311 = scalar_lea.vmem %s0, %s310
      %p312 = pneg %p53
      %p313 = pneg %p50
      %p314 = pneg %p74
      %p315 = pneg %p71
      %p316 = pneg %p95
      %p317 = pneg %p92
      %p318 = pneg %p116
      %p319 = pneg %p113
      %p320 = pneg %p137
      %p321 = pneg %p134
      %p322 = pneg %p158
      %p323 = pneg %p155
      %p324 = pneg %p179
      %p325 = pneg %p176
      %p326 = pneg %p200
      %p327 = pneg %p197
      %p328 = pneg %p221
      %p329 = pneg %p218
      %p330 = pneg %p249
      %p331 = pneg %p246
      %s332 = smul.u32 8, %s25
      %p333 = scmp.lt.s32.totalorder %s24, 1
      %s334 = scalar_select %p333, %s24, 1
      %p335 = scmp.lt.s32.totalorder %s332, 7
      %s336 = scalar_select %p335, %s332, 7
      %s337 = smul.addr %s334, 8
      %s338 = sadd.s32 %s336, %s337
      %s339 = smul.addr %s338, 8
      %s340 = scalar_lea.vmem %s9, %s339
      %p341 = scmp.lt.s32.totalorder %s24, 1
      %s342 = scalar_select %p341, %s24, 1
      %s343 = smul.addr %s342, 8
      %s344 = smul.addr %s343, 8
      %s345 = scalar_lea.vmem %s0, %s344
      %s346 = smul.u32 8, %s25
      %p347 = scmp.lt.s32.totalorder %s24, 1
      %s348 = scalar_select %p347, %s24, 1
      %p349 = scmp.lt.s32.totalorder %s346, 7
      %s350 = scalar_select %p349, %s346, 7
      %s351 = smul.addr %s348, 8
      %s352 = sadd.s32 %s350, %s351
      %s353 = smul.addr %s352, 8
      %s354 = scalar_lea.vmem %s9, %s353
      %s355 = smul.u32 8, %s25
      %p357 = scmp.eq.s32.totalorder %s25, 0
      // Predicated region
      $region57: #{tpu_custom_call.1} parent=55 // pred_check
        %p358 = pneg %p357
      $region58: #{tpu_custom_call.1} parent=55 // pred_check_branch
        %360 = sbr.rel (%p358) target = $region60
      $region59: #{tpu_custom_call.1} parent=55 // pred_region
        %v361 = vld [vmem:[%s345] sm:$0xff]
        %v362 = vld [vmem:[%s345 + $0x8] sm:$0xff]
        %v363 = vld [vmem:[%s345 + $0x10] sm:$0xff]
        %v364 = vld [vmem:[%s345 + $0x18] sm:$0xff]
        %v365 = vld [vmem:[%s345 + $0x20] sm:$0xff]
        %v366 = vld [vmem:[%s345 + $0x28] sm:$0xff]
        %v367 = vld [vmem:[%s345 + $0x30] sm:$0xff]
        %v368 = vld [vmem:[%s345 + $0x38] sm:$0xff]
        %v369 = vpack.c.bf16 %v362, %v361
        %v370 = vpack.c.bf16 %v364, %v363
        %v371 = vpack.c.bf16 %v366, %v365
        %v372 = vpack.c.bf16 %v368, %v367
        %v373 = vld [vmem:[%s2] sm:$0xf]
        %v374 = vld [vmem:[%s2 + $0x4] sm:$0xf]
        %v375 = vld [vmem:[%s2 + $0x8] sm:$0xf]
        %v376 = vld [vmem:[%s2 + $0xc] sm:$0xf]
        %v377 = vld [vmem:[%s5] sm:$0x1]
        %v379 = vperm.slane %v377, 0
        %v385 = vunpack.c.l.b16 %v373
        %v386 = vunpack.c.l.b16 %v374
        %v387 = vunpack.c.l.b16 %v375
        %v388 = vunpack.c.l.b16 %v376
        %v389 = vpack.c.b16 %v386, %v385
        %v390 = vpack.c.b16 %v388, %v387
        %vm393 = vcmask 261120
        %v395 = vsel %vm393, %v369, 0
        %v398 = vsel %vm393, %v370, 0
        %v401 = vsel %vm393, %v371, 0
        %v404 = vsel %vm393, %v372, 0
        %406 = vmatpush.bf16.msra.mxu0 0
        %407 = vmatpush.bf16.msra.mxu0 0
        %408 = vmatpush.bf16.msra.mxu0 0
        %409 = vmatpush.bf16.msra.mxu0 0
        %410 = vmatpush.bf16.msra.mxu0 0
        %411 = vmatpush.bf16.msra.mxu0 0
        %412 = vmatpush.bf16.msra.mxu0 %v390
        %413 = vmatpush.bf16.msra.mxu0 %v389
        %414 = vmatmul.bf16.gmra.mxu0 %v395
        %v415 = vpop.f32.mrf.mxu0
        %v416 = vadd.f32 %v379, %v415
        %v417 = vpop.f32.mrf.mxu0
        %v418 = vadd.f32 %v379, %v417
        %419 = vmatmul.bf16.gmra.mxu0 %v398
        %v420 = vpop.f32.mrf.mxu0
        %v421 = vadd.f32 %v379, %v420
        %v422 = vpop.f32.mrf.mxu0
        %v423 = vadd.f32 %v379, %v422
        %424 = vmatmul.bf16.gmra.mxu0 %v401
        %v425 = vpop.f32.mrf.mxu0
        %v426 = vadd.f32 %v379, %v425
        %v427 = vpop.f32.mrf.mxu0
        %v428 = vadd.f32 %v379, %v427
        %429 = vmatmul.bf16.gmra.mxu0 %v404
        %v430 = vpop.f32.mrf.mxu0
        %v431 = vadd.f32 %v379, %v430
        %v432 = vpop.f32.mrf.mxu0
        %v433 = vadd.f32 %v379, %v432
        %434 = vdwg.mxu0
        %v435 = vld [vmem:[%s3] sm:$0xf]
        %v436 = vld [vmem:[%s3 + $0x4] sm:$0xf]
        %v437 = vld [vmem:[%s3 + $0x8] sm:$0xf]
        %v438 = vld [vmem:[%s3 + $0xc] sm:$0xf]
        %v439 = vld [vmem:[%s6] sm:$0x1]
        %v441 = vperm.slane %v439, 0
        %v447 = vunpack.c.l.b16 %v435
        %v448 = vunpack.c.l.b16 %v436
        %v449 = vunpack.c.l.b16 %v437
        %v450 = vunpack.c.l.b16 %v438
        %v451 = vpack.c.b16 %v448, %v447
        %v452 = vpack.c.b16 %v450, %v449
        %455 = vmatpush.bf16.msra.mxu0 0
        %456 = vmatpush.bf16.msra.mxu0 0
        %457 = vmatpush.bf16.msra.mxu0 0
        %458 = vmatpush.bf16.msra.mxu0 0
        %459 = vmatpush.bf16.msra.mxu0 0
        %460 = vmatpush.bf16.msra.mxu0 0
        %461 = vmatpush.bf16.msra.mxu0 %v452
        %462 = vmatpush.bf16.msra.mxu0 %v451
        %463 = vmatmul.bf16.gmra.mxu0 %v395
        %v464 = vpop.f32.mrf.mxu0
        %v465 = vadd.f32 %v441, %v464
        %v466 = vpop.f32.mrf.mxu0
        %v467 = vadd.f32 %v441, %v466
        %468 = vmatmul.bf16.gmra.mxu0 %v398
        %v469 = vpop.f32.mrf.mxu0
        %v470 = vadd.f32 %v441, %v469
        %v471 = vpop.f32.mrf.mxu0
        %v472 = vadd.f32 %v441, %v471
        %473 = vmatmul.bf16.gmra.mxu0 %v401
        %v474 = vpop.f32.mrf.mxu0
        %v475 = vadd.f32 %v441, %v474
        %v476 = vpop.f32.mrf.mxu0
        %v477 = vadd.f32 %v441, %v476
        %478 = vmatmul.bf16.gmra.mxu0 %v404
        %v479 = vpop.f32.mrf.mxu0
        %v480 = vadd.f32 %v441, %v479
        %v481 = vpop.f32.mrf.mxu0
        %v482 = vadd.f32 %v441, %v481
        %483 = vdwg.mxu0
        %v484 = vpack.c.bf16 %v416, %v416
        %v485 = vpack.c.bf16 %v418, %v418
        %v486 = vpack.c.bf16 %v421, %v421
        %v487 = vpack.c.bf16 %v423, %v423
        %v488 = vpack.c.bf16 %v426, %v426
        %v489 = vpack.c.bf16 %v428, %v428
        %v490 = vpack.c.bf16 %v431, %v431
        %v491 = vpack.c.bf16 %v433, %v433
        %vm492 = vcmask 257024
        %493 = vst.msk [vmem:[#allocation2] sm:$0xf] %vm492, %v484
        %494 = vst.msk [vmem:[#allocation2 + $0x4] sm:$0xf] %vm492, %v485
        %495 = vst.msk [vmem:[#allocation2 + $0x8] sm:$0xf] %vm492, %v486
        %496 = vst.msk [vmem:[#allocation2 + $0xc] sm:$0xf] %vm492, %v487
        %497 = vst.msk [vmem:[#allocation2 + $0x10] sm:$0xf] %vm492, %v488
        %498 = vst.msk [vmem:[#allocation2 + $0x14] sm:$0xf] %vm492, %v489
        %499 = vst.msk [vmem:[#allocation2 + $0x18] sm:$0xf] %vm492, %v490
        %500 = vst.msk [vmem:[#allocation2 + $0x1c] sm:$0xf] %vm492, %v491
        %v501 = vpack.c.bf16 %v465, %v465
        %v502 = vpack.c.bf16 %v467, %v467
        %v503 = vpack.c.bf16 %v470, %v470
        %v504 = vpack.c.bf16 %v472, %v472
        %v505 = vpack.c.bf16 %v475, %v475
        %v506 = vpack.c.bf16 %v477, %v477
        %v507 = vpack.c.bf16 %v480, %v480
        %v508 = vpack.c.bf16 %v482, %v482
        %509 = vst.msk [vmem:[#allocation3] sm:$0xf] %vm492, %v501
        %510 = vst.msk [vmem:[#allocation3 + $0x4] sm:$0xf] %vm492, %v502
        %511 = vst.msk [vmem:[#allocation3 + $0x8] sm:$0xf] %vm492, %v503
        %512 = vst.msk [vmem:[#allocation3 + $0xc] sm:$0xf] %vm492, %v504
        %513 = vst.msk [vmem:[#allocation3 + $0x10] sm:$0xf] %vm492, %v505
        %514 = vst.msk [vmem:[#allocation3 + $0x14] sm:$0xf] %vm492, %v506
        %515 = vst.msk [vmem:[#allocation3 + $0x18] sm:$0xf] %vm492, %v507
        %516 = vst.msk [vmem:[#allocation3 + $0x1c] sm:$0xf] %vm492, %v508
      $region60: #{tpu_custom_call.1} parent=55 // pred_fallthru
        _
      %s517 = smul.u32 %s25, 64
      %s518 = scalar_lea.vmem %s345, %s517
      %v519 = vld [vmem:[%s518] sm:$0xff]
      %v520 = vld [vmem:[%s518 + $0x8] sm:$0xff]
      %v521 = vld [vmem:[%s518 + $0x10] sm:$0xff]
      %v522 = vld [vmem:[%s518 + $0x18] sm:$0xff]
      %v523 = vld [vmem:[%s518 + $0x20] sm:$0xff]
      %v524 = vld [vmem:[%s518 + $0x28] sm:$0xff]
      %v525 = vld [vmem:[%s518 + $0x30] sm:$0xff]
      %v526 = vld [vmem:[%s518 + $0x38] sm:$0xff]
      %v527 = vpack.c.bf16 %v520, %v519
      %v528 = vpack.c.bf16 %v522, %v521
      %v529 = vpack.c.bf16 %v524, %v523
      %v530 = vpack.c.bf16 %v526, %v525
      %v531 = vld [vmem:[%s1] sm:$0xf]
      %v532 = vld [vmem:[%s1 + $0x4] sm:$0xf]
      %v533 = vld [vmem:[%s1 + $0x8] sm:$0xf]
      %v534 = vld [vmem:[%s1 + $0xc] sm:$0xf]
      %v535 = vld [vmem:[%s4] sm:$0x1]
      %v537 = vperm.slane %v535, 0
      %v543 = vunpack.c.l.b16 %v531
      %v544 = vunpack.c.l.b16 %v532
      %v545 = vunpack.c.l.b16 %v533
      %v546 = vunpack.c.l.b16 %v534
      %v547 = vpack.c.b16 %v544, %v543
      %v548 = vpack.c.b16 %v546, %v545
      %vm551 = vcmask 261120
      %v553 = vsel %vm551, %v527, 0
      %v556 = vsel %vm551, %v528, 0
      %v559 = vsel %vm551, %v529, 0
      %v562 = vsel %vm551, %v530, 0
      %564 = vmatpush.bf16.msra.mxu0 0
      %565 = vmatpush.bf16.msra.mxu0 0
      %566 = vmatpush.bf16.msra.mxu0 0
      %567 = vmatpush.bf16.msra.mxu0 0
      %568 = vmatpush.bf16.msra.mxu0 0
      %569 = vmatpush.bf16.msra.mxu0 0
      %570 = vmatpush.bf16.msra.mxu0 %v548
      %571 = vmatpush.bf16.msra.mxu0 %v547
      %572 = vmatmul.bf16.gmra.mxu0 %v553
      %v573 = vpop.f32.mrf.mxu0
      %v574 = vadd.f32 %v537, %v573
      %v575 = vpop.f32.mrf.mxu0
      %v576 = vadd.f32 %v537, %v575
      %577 = vmatmul.bf16.gmra.mxu0 %v556
      %v578 = vpop.f32.mrf.mxu0
      %v579 = vadd.f32 %v537, %v578
      %v580 = vpop.f32.mrf.mxu0
      %v581 = vadd.f32 %v537, %v580
      %582 = vmatmul.bf16.gmra.mxu0 %v559
      %v583 = vpop.f32.mrf.mxu0
      %v584 = vadd.f32 %v537, %v583
      %v585 = vpop.f32.mrf.mxu0
      %v586 = vadd.f32 %v537, %v585
      %587 = vmatmul.bf16.gmra.mxu0 %v562
      %v588 = vpop.f32.mrf.mxu0
      %v589 = vadd.f32 %v537, %v588
      %v590 = vpop.f32.mrf.mxu0
      %v591 = vadd.f32 %v537, %v590
      %592 = vdwg.mxu0
      %v593 = vpack.c.bf16 %v576, %v574
      %v594 = vpack.c.bf16 %v581, %v579
      %v595 = vpack.c.bf16 %v586, %v584
      %v596 = vpack.c.bf16 %v591, %v589
      %v597 = vld [vmem:[#allocation2] sm:$0xf]
      %v598 = vld [vmem:[#allocation2 + $0x4] sm:$0xf]
      %v599 = vld [vmem:[#allocation2 + $0x8] sm:$0xf]
      %v600 = vld [vmem:[#allocation2 + $0xc] sm:$0xf]
      %v601 = vld [vmem:[#allocation2 + $0x10] sm:$0xf]
      %v602 = vld [vmem:[#allocation2 + $0x14] sm:$0xf]
      %v603 = vld [vmem:[#allocation2 + $0x18] sm:$0xf]
      %v604 = vld [vmem:[#allocation2 + $0x1c] sm:$0xf]
      %v605 = vld [vmem:[#allocation3] sm:$0xf]
      %v606 = vld [vmem:[#allocation3 + $0x4] sm:$0xf]
      %v607 = vld [vmem:[#allocation3 + $0x8] sm:$0xf]
      %v608 = vld [vmem:[#allocation3 + $0xc] sm:$0xf]
      %v609 = vld [vmem:[#allocation3 + $0x10] sm:$0xf]
      %v610 = vld [vmem:[#allocation3 + $0x14] sm:$0xf]
      %v611 = vld [vmem:[#allocation3 + $0x18] sm:$0xf]
      %v612 = vld [vmem:[#allocation3 + $0x1c] sm:$0xf]
      %v621 = vunpack.c.l.b16 %v597
      %v622 = vunpack.c.l.b16 %v598
      %v623 = vunpack.c.l.b16 %v599
      %v624 = vunpack.c.l.b16 %v600
      %v625 = vunpack.c.l.b16 %v601
      %v626 = vunpack.c.l.b16 %v602
      %v627 = vunpack.c.l.b16 %v603
      %v628 = vunpack.c.l.b16 %v604
      %v629 = vpack.c.b16 %v622, %v621
      %v630 = vpack.c.b16 %v624, %v623
      %v631 = vpack.c.b16 %v626, %v625
      %v632 = vpack.c.b16 %v628, %v627
      %v634 = vsel %vm551, %v593, 0
      %v637 = vsel %vm551, %v594, 0
      %v640 = vsel %vm551, %v595, 0
      %v643 = vsel %vm551, %v596, 0
      %v646 = vsel %vm551, %v629, 0
      %v649 = vsel %vm551, %v630, 0
      %v652 = vsel %vm551, %v631, 0
      %v655 = vsel %vm551, %v632, 0
      %657 = vmatpush.bf16.xpose.msra.mxu0 0
      %658 = vmatpush.bf16.xpose.msra.mxu0 0
      %659 = vmatpush.bf16.xpose.msra.mxu0 0
      %660 = vmatpush.bf16.xpose.msra.mxu0 0
      %661 = vmatpush.bf16.xpose.msra.mxu0 %v655
      %662 = vmatpush.bf16.xpose.msra.mxu0 %v652
      %663 = vmatpush.bf16.xpose.msra.mxu0 %v649
      %664 = vmatpush.bf16.xpose.msra.mxu0 %v646
      %665 = vmatmul.bf16.gmra.mxu0 %v634
      %v666 = vpop.f32.mrf.mxu0
      %v667 = vadd.f32 0.0, %v666
      %v668 = vpop.f32.mrf.mxu0
      %v669 = vadd.f32 0.0, %v668
      %670 = vmatmul.bf16.gmra.mxu0 %v637
      %v671 = vpop.f32.mrf.mxu0
      %v672 = vadd.f32 0.0, %v671
      %v673 = vpop.f32.mrf.mxu0
      %v674 = vadd.f32 0.0, %v673
      %675 = vmatmul.bf16.gmra.mxu0 %v640
      %v676 = vpop.f32.mrf.mxu0
      %v677 = vadd.f32 0.0, %v676
      %v678 = vpop.f32.mrf.mxu0
      %v679 = vadd.f32 0.0, %v678
      %680 = vmatmul.bf16.gmra.mxu0 %v643
      %v681 = vpop.f32.mrf.mxu0
      %v682 = vadd.f32 0.0, %v681
      %v683 = vpop.f32.mrf.mxu0
      %v684 = vadd.f32 0.0, %v683
      %685 = vdwg.mxu0
      %vm686 = vcmask 523264
      %v687 = vsel %vm686, %v667, -inf
      %688 = vmax.xlane.f32.xlu0 %v687
      %v689 = vpop.xlane.xlu0 %688
      %v690 = vsel %vm686, %v669, -inf
      %691 = vmax.xlane.f32.xlu0 %v690
      %v692 = vpop.xlane.xlu0 %691
      %v693 = vsel %vm686, %v672, -inf
      %694 = vmax.xlane.f32.xlu0 %v693
      %v695 = vpop.xlane.xlu0 %694
      %v696 = vsel %vm686, %v674, -inf
      %697 = vmax.xlane.f32.xlu0 %v696
      %v698 = vpop.xlane.xlu0 %697
      %v699 = vsel %vm686, %v677, -inf
      %700 = vmax.xlane.f32.xlu0 %v699
      %v701 = vpop.xlane.xlu0 %700
      %v702 = vsel %vm686, %v679, -inf
      %703 = vmax.xlane.f32.xlu0 %v702
      %v704 = vpop.xlane.xlu0 %703
      %v705 = vsel %vm686, %v682, -inf
      %706 = vmax.xlane.f32.xlu0 %v705
      %v707 = vpop.xlane.xlu0 %706
      %v708 = vsel %vm686, %v684, -inf
      %709 = vmax.xlane.f32.xlu0 %v708
      %v710 = vpop.xlane.xlu0 %709
      %v711 = vsub.f32 %v667, %v689
      %v712 = vsub.f32 %v669, %v692
      %v713 = vsub.f32 %v672, %v695
      %v714 = vsub.f32 %v674, %v698
      %v715 = vsub.f32 %v677, %v701
      %v716 = vsub.f32 %v679, %v704
      %v717 = vsub.f32 %v682, %v707
      %v718 = vsub.f32 %v684, %v710
      %v719 = vmul.f32 %v711, 1.442695
      %v720 = vpow.pop %v719
      %v721 = vmul.f32 %v712, 1.442695
      %v722 = vpow.pop %v721
      %v723 = vmul.f32 %v713, 1.442695
      %v724 = vpow.pop %v723
      %v725 = vmul.f32 %v714, 1.442695
      %v726 = vpow.pop %v725
      %v727 = vmul.f32 %v715, 1.442695
      %v728 = vpow.pop %v727
      %v729 = vmul.f32 %v716, 1.442695
      %v730 = vpow.pop %v729
      %v731 = vmul.f32 %v717, 1.442695
      %v732 = vpow.pop %v731
      %v733 = vmul.f32 %v718, 1.442695
      %v734 = vpow.pop %v733
      %v735 = vsel %vm686, %v720, 0.0
      %736 = vadd.xlane.f32.xlu0 %v735
      %v737 = vpop.xlane.xlu0 %736
      %v738 = vsel %vm686, %v722, 0.0
      %739 = vadd.xlane.f32.xlu0 %v738
      %v740 = vpop.xlane.xlu0 %739
      %v741 = vsel %vm686, %v724, 0.0
      %742 = vadd.xlane.f32.xlu0 %v741
      %v743 = vpop.xlane.xlu0 %742
      %v744 = vsel %vm686, %v726, 0.0
      %745 = vadd.xlane.f32.xlu0 %v744
      %v746 = vpop.xlane.xlu0 %745
      %v747 = vsel %vm686, %v728, 0.0
      %748 = vadd.xlane.f32.xlu0 %v747
      %v749 = vpop.xlane.xlu0 %748
      %v750 = vsel %vm686, %v730, 0.0
      %751 = vadd.xlane.f32.xlu0 %v750
      %v752 = vpop.xlane.xlu0 %751
      %v753 = vsel %vm686, %v732, 0.0
      %754 = vadd.xlane.f32.xlu0 %v753
      %v755 = vpop.xlane.xlu0 %754
      %v756 = vsel %vm686, %v734, 0.0
      %757 = vadd.xlane.f32.xlu0 %v756
      %v758 = vpop.xlane.xlu0 %757
      %v759 = vrcp.pop %v737
      %v760 = vrcp.pop %v740
      %v761 = vrcp.pop %v743
      %v762 = vrcp.pop %v746
      %v763 = vrcp.pop %v749
      %v764 = vrcp.pop %v752
      %v765 = vrcp.pop %v755
      %v766 = vrcp.pop %v758
      %v767 = vmul.f32 %v720, %v759
      %v768 = vmul.f32 %v722, %v760
      %v769 = vmul.f32 %v724, %v761
      %v770 = vmul.f32 %v726, %v762
      %v771 = vmul.f32 %v728, %v763
      %v772 = vmul.f32 %v730, %v764
      %v773 = vmul.f32 %v732, %v765
      %v774 = vmul.f32 %v734, %v766
      %v775 = vpack.c.bf16 %v768, %v767
      %v776 = vpack.c.bf16 %v770, %v769
      %v777 = vpack.c.bf16 %v772, %v771
      %v778 = vpack.c.bf16 %v774, %v773
      %v787 = vunpack.c.l.b16 %v605
      %v788 = vunpack.c.l.b16 %v606
      %v789 = vunpack.c.l.b16 %v607
      %v790 = vunpack.c.l.b16 %v608
      %v791 = vunpack.c.l.b16 %v609
      %v792 = vunpack.c.l.b16 %v610
      %v793 = vunpack.c.l.b16 %v611
      %v794 = vunpack.c.l.b16 %v612
      %v795 = vpack.c.b16 %v788, %v787
      %v796 = vpack.c.b16 %v790, %v789
      %v797 = vpack.c.b16 %v792, %v791
      %v798 = vpack.c.b16 %v794, %v793
      %v804 = vsel %vm686, %v775, 0
      %v807 = vsel %vm686, %v776, 0
      %v810 = vsel %vm686, %v777, 0
      %v813 = vsel %vm686, %v778, 0
      %815 = vmatpush.bf16.msra.mxu0 0
      %816 = vmatpush.bf16.msra.mxu0 0
      %817 = vmatpush.bf16.msra.mxu0 0
      %818 = vmatpush.bf16.msra.mxu0 0
      %819 = vmatpush.bf16.msra.mxu0 %v798
      %820 = vmatpush.bf16.msra.mxu0 %v797
      %821 = vmatpush.bf16.msra.mxu0 %v796
      %822 = vmatpush.bf16.msra.mxu0 %v795
      %823 = vmatmul.bf16.gmra.mxu0 %v804
      %v824 = vpop.f32.mrf.mxu0
      %v825 = vadd.f32 0.0, %v824
      %v826 = vpop.f32.mrf.mxu0
      %v827 = vadd.f32 0.0, %v826
      %828 = vmatmul.bf16.gmra.mxu0 %v807
      %v829 = vpop.f32.mrf.mxu0
      %v830 = vadd.f32 0.0, %v829
      %v831 = vpop.f32.mrf.mxu0
      %v832 = vadd.f32 0.0, %v831
      %833 = vmatmul.bf16.gmra.mxu0 %v810
      %v834 = vpop.f32.mrf.mxu0
      %v835 = vadd.f32 0.0, %v834
      %v836 = vpop.f32.mrf.mxu0
      %v837 = vadd.f32 0.0, %v836
      %838 = vmatmul.bf16.gmra.mxu0 %v813
      %v839 = vpop.f32.mrf.mxu0
      %v840 = vadd.f32 0.0, %v839
      %v841 = vpop.f32.mrf.mxu0
      %v842 = vadd.f32 0.0, %v841
      %843 = vdwg.mxu0
      %v844 = vpack.c.bf16 %v827, %v825
      %v845 = vpack.c.bf16 %v832, %v830
      %v846 = vpack.c.bf16 %v837, %v835
      %v847 = vpack.c.bf16 %v842, %v840
      %v848 = vld [vmem:[%s7] sm:$0xf]
      %v849 = vld [vmem:[%s7 + $0x4] sm:$0xf]
      %v850 = vld [vmem:[%s7 + $0x8] sm:$0xf]
      %v851 = vld [vmem:[%s7 + $0xc] sm:$0xf]
      %v852 = vld [vmem:[%s8] sm:$0x1]
      %v854 = vperm.slane %v852, 0
      %v860 = vunpack.c.l.b16 %v848
      %v861 = vunpack.c.l.b16 %v849
      %v862 = vunpack.c.l.b16 %v850
      %v863 = vunpack.c.l.b16 %v851
      %v864 = vpack.c.b16 %v861, %v860
      %v865 = vpack.c.b16 %v863, %v862
      %v869 = vsel %vm551, %v844, 0
      %v872 = vsel %vm551, %v845, 0
      %v875 = vsel %vm551, %v846, 0
      %v878 = vsel %vm551, %v847, 0
      %880 = vmatpush.bf16.msra.mxu0 0
      %881 = vmatpush.bf16.msra.mxu0 0
      %882 = vmatpush.bf16.msra.mxu0 0
      %883 = vmatpush.bf16.msra.mxu0 0
      %884 = vmatpush.bf16.msra.mxu0 0
      %885 = vmatpush.bf16.msra.mxu0 0
      %886 = vmatpush.bf16.msra.mxu0 %v865
      %887 = vmatpush.bf16.msra.mxu0 %v864
      %888 = vmatmul.bf16.gmra.mxu0 %v869
      %v889 = vpop.f32.mrf.mxu0
      %v890 = vadd.f32 %v854, %v889
      %v891 = vpop.f32.mrf.mxu0
      %v892 = vadd.f32 %v854, %v891
      %893 = vmatmul.bf16.gmra.mxu0 %v872
      %v894 = vpop.f32.mrf.mxu0
      %v895 = vadd.f32 %v854, %v894
      %v896 = vpop.f32.mrf.mxu0
      %v897 = vadd.f32 %v854, %v896
      %898 = vmatmul.bf16.gmra.mxu0 %v875
      %v899 = vpop.f32.mrf.mxu0
      %v900 = vadd.f32 %v854, %v899
      %v901 = vpop.f32.mrf.mxu0
      %v902 = vadd.f32 %v854, %v901
      %903 = vmatmul.bf16.gmra.mxu0 %v878
      %v904 = vpop.f32.mrf.mxu0
      %v905 = vadd.f32 %v854, %v904
      %v906 = vpop.f32.mrf.mxu0
      %v907 = vadd.f32 %v854, %v906
      %908 = vdwg.mxu0
      %v909 = vadd.f32 %v890, %v519
      %v910 = vadd.f32 %v892, %v520
      %v911 = vadd.f32 %v895, %v521
      %v912 = vadd.f32 %v897, %v522
      %v913 = vadd.f32 %v900, %v523
      %v914 = vadd.f32 %v902, %v524
      %v915 = vadd.f32 %v905, %v525
      %v916 = vadd.f32 %v907, %v526
      %917 = vst.msk [vmem:[%s354] sm:$0xff] %vm551, %v909
      %918 = vst.msk [vmem:[%s354 + $0x8] sm:$0xff] %vm551, %v910
      %919 = vst.msk [vmem:[%s354 + $0x10] sm:$0xff] %vm551, %v911
      %920 = vst.msk [vmem:[%s354 + $0x18] sm:$0xff] %vm551, %v912
      %921 = vst.msk [vmem:[%s354 + $0x20] sm:$0xff] %vm551, %v913
      %922 = vst.msk [vmem:[%s354 + $0x28] sm:$0xff] %vm551, %v914
      %923 = vst.msk [vmem:[%s354 + $0x30] sm:$0xff] %vm551, %v915
      %924 = vst.msk [vmem:[%s354 + $0x38] sm:$0xff] %vm551, %v916
      %s925 = smul.u32 8, %s25
      %p926 = scmp.lt.s32.totalorder %s24, 1
      %s927 = scalar_select %p926, %s24, 1
      %p928 = scmp.lt.s32.totalorder %s925, 7
      %s929 = scalar_select %p928, %s925, 7
      %s930 = smul.addr %s927, 8
      %s931 = sadd.s32 %s929, %s930
      %s932 = smul.addr %s931, 8
      %s933 = scalar_lea.vmem %s9, %s932
      // Predicated region
      $region61: #{tpu_custom_call.1} parent=55 // pred_check
        %p934 = pneg %p246
      $region62: #{tpu_custom_call.1} parent=55 // pred_check_branch
        %936 = sbr.rel (%p934) target = $region64
      $region63: #{tpu_custom_call.1} parent=55 // pred_region
        %s937 = smul.u32 8, %s25
      $region64: #{tpu_custom_call.1} parent=55 // pred_fallthru
        _
    $region56: #{tpu_custom_call.1} parent=5 // pred_fallthru
      _
    %p938 = scmp.le.s32.totalorder 2, %s15
    // Predicated region
    $region65: #{tpu_custom_call.1} parent=5 // pred_check
      %p939 = pneg %p938
    $region66: #{tpu_custom_call.1} parent=5 // pred_check_branch
      %941 = sbr.rel (%p939) target = $region68
    $region67: #{tpu_custom_call.1} parent=5 // pred_region
      %s942 = ssub.s32 %s15, 2
      // Predicated region
      $region69: #{tpu_custom_call.1} parent=67 // pred_check
        %p943 = pneg %p252
      $region70: #{tpu_custom_call.1} parent=67 // pred_check_branch
        %945 = sbr.rel (%p943) target = $region72
      $region71: #{tpu_custom_call.1} parent=67 // pred_region
        %s946 = smul.u32 8, %s27
        %p947 = scmp.lt.s32.totalorder %s26, 1
        %s948 = scalar_select %p947, %s26, 1
        %p949 = scmp.lt.s32.totalorder %s946, 7
        %s950 = scalar_select %p949, %s946, 7
        %s951 = smul.addr %s948, 8
        %s952 = sadd.s32 %s950, %s951
        %s953 = smul.addr %s952, 8
        %s954 = scalar_lea.vmem %s9, %s953
      $region72: #{tpu_custom_call.1} parent=67 // pred_fallthru
        _
    $region68: #{tpu_custom_call.1} parent=5 // pred_fallthru
      _
  $region6: #{tpu_custom_call.1} parent=0 // loop_footer
    %s19 = sadd.s32 1, %s15
  $region7: #{tpu_custom_call.1} parent=0 // loop_footer_branch
    %14 = sbr.rel target = $region3
  $region8: #{tpu_custom_call.1} parent=0 // loop_exit
    _

</llo_original>
